<compile_context>
chip_gen: v5e
topology: v5e:2x2
jax: 0.10.0
libtpu: 0.0.40
codegen_flags: <defaults>
</compile_context>

<pallas_src>
import functools

import jax
import jax.numpy as jnp
from jax.experimental import pallas as pl
from jax.experimental.pallas import tpu as pltpu


_TILE_CANDIDATES = (8192, 4096, 2048, 1024, 512, 256, 128, 64, 32, 16, 8)


def _round_up(x, m):
    return ((x + m - 1) // m) * m


def _vmem_plan():
    """(vmem_limit_bytes, tile_budget_bytes), generation aware."""
    cap = None
    try:
        info = pltpu.get_tpu_info()
        cap = getattr(info, "vmem_capacity_bytes", None)
    except Exception:
        cap = None
    if cap is None:
        cap = 64 * 1024 * 1024                       # conservative: v7x-sized
    if cap >= 100 * 1024 * 1024:                     # v5e / v6e: 128 MiB VMEM
        return 96 * 1024 * 1024, 64 * 1024 * 1024
    return 32 * 1024 * 1024, 24 * 1024 * 1024        # v7x: 64 MiB VMEM


def _choose_tile_n(n, per_node_bytes, fixed_bytes, budget_bytes):
    """Largest node tile (multiple of 8) fitting the VMEM budget, capped so
    the 'parallel' node grid axis has >= 4 steps when possible (pipelining on
    both TensorCores of a megacore)."""
    n8 = _round_up(max(n, 1), 8)
    if n8 >= 32:
        cap = max(8, _round_up(pl.cdiv(n, 4), 8))
    else:
        cap = n8
    for cand in _TILE_CANDIDATES:
        if cand <= cap and fixed_bytes + cand * per_node_bytes <= budget_bytes:
            return cand
    return 8


def _aggregator_kernel(*refs, reduce_op, use_bias, precision):
    if use_bias:
        x_ref, w_ref, b_ref, o_ref = refs
    else:
        x_ref, w_ref, o_ref = refs
        b_ref = None

    w = w_ref[...]
    x = x_ref[...]

    if reduce_op == "dot":
        # Neighbor reduction fused into the MXU contraction:
        # x is (tile_n, K*D), w is tile(weight[*1/K], (K, 1)) -> (K*D, O).
        lhs = x
    elif reduce_op == "sum":
        # 3-D block (tile_n, K, D); single sublane reduction over K.
        lhs = jnp.sum(x.astype(jnp.float32), axis=1)
    else:  # "max"
        lhs = jnp.max(x, axis=1)

    if lhs.dtype != w.dtype:
        lhs = lhs.astype(w.dtype)

    hidden = jnp.dot(lhs, w, preferred_element_type=jnp.float32,
                     precision=precision)
    if use_bias:
        hidden = hidden + b_ref[...].astype(jnp.float32)
    o_ref[...] = hidden.astype(o_ref.dtype)


def neighbor_aggregator(neighbor_feature, weight, bias=None, *,
                        aggr_method="mean", tile_n=None, fuse_reduction=None,
                        precision=None):
    """Pallas implementation of NeighborAggregator.forward.

    neighbor_feature: (N, K, D)  float32 or bfloat16
    weight:           (D, O)
    bias:             (O,) or None
    returns:          (N, O)
    """
    if aggr_method not in ("mean", "sum", "max"):
        raise ValueError(
            "Unknown aggr type, expected sum, max, or mean, but got {}".format(
                aggr_method))

    n, k, d = neighbor_feature.shape
    d_w, o = weight.shape
    assert d == d_w, "input_dim mismatch"

    compute_dtype = jnp.result_type(neighbor_feature.dtype, weight.dtype)
    out_dtype = compute_dtype
    use_bias = bias is not None

    vmem_limit, vmem_budget = _vmem_plan()

    x_item = jnp.dtype(neighbor_feature.dtype).itemsize
    w_item = jnp.dtype(compute_dtype).itemsize
    out_item = jnp.dtype(out_dtype).itemsize
    o_vmem = _round_up(o, 128)                       # lane padding inside VMEM

    # Trace-time weight prep: fold the 1/K mean scale into the small weight.
    w = weight.astype(compute_dtype)
    if aggr_method == "mean":
        w = w * jnp.asarray(1.0 / k, dtype=compute_dtype)

    # Decide whether to fuse the K-reduction into the matmul (sum/mean only).
    if fuse_reduction is None:
        fuse = aggr_method in ("mean", "sum")
    else:
        fuse = bool(fuse_reduction) and aggr_method != "max"
    if fuse and 2 * (k * d) * o_vmem * w_item > vmem_budget // 2:
        # TODO(synk): add an O-tiled grid axis (plus a K*D reduction axis with
        # a pl.when-guarded accumulator) for very large D*O instead of this
        # small-weight fallback.
        fuse = False

    if fuse:
        x_op = neighbor_feature.reshape(n, k * d)    # free: contiguous dims
        w_op = jnp.tile(w, (k, 1))                   # (K*D, O), VMEM resident
        reduce_op = "dot"
        in_row = _round_up(k * d, 128) * x_item
        tmp_row = (_round_up(k * d, 128) * 4
                   if neighbor_feature.dtype != compute_dtype else 0)
    else:
        x_op = neighbor_feature                      # (N, K, D): 3-D blocks
        w_op = w                                     # (D, O)
        reduce_op = "max" if aggr_method == "max" else "sum"
        in_row = _round_up(k, 8) * _round_up(d, 128) * x_item
        tmp_row = _round_up(d, 128) * 4

    # VMEM model: double-buffered input & output blocks + temporaries,
    # plus the (double-buffered, constant-index) weight and bias.
    per_node = 2 * in_row + 2 * o_vmem * out_item + tmp_row + o_vmem * 4
    fixed = 2 * w_op.shape[0] * o_vmem * w_item
    if use_bias:
        fixed += 2 * o_vmem * 4

    if tile_n is None:
        tile_n = _choose_tile_n(n, per_node, fixed, vmem_budget)
    grid = (pl.cdiv(n, tile_n),)

    if fuse:
        x_spec = pl.BlockSpec((tile_n, k * d), lambda i: (i, 0))
    else:
        x_spec = pl.BlockSpec((tile_n, k, d), lambda i: (i, 0, 0))
    in_specs = [x_spec, pl.BlockSpec(w_op.shape, lambda i: (0, 0))]
    operands = [x_op, w_op]
    if use_bias:
        operands.append(bias.astype(compute_dtype).reshape(1, o))
        in_specs.append(pl.BlockSpec((1, o), lambda i: (0, 0)))

    kernel = functools.partial(
        _aggregator_kernel,
        reduce_op=reduce_op,
        use_bias=use_bias,
        precision=precision)

    return pl.pallas_call(
        kernel,
        out_shape=jax.ShapeDtypeStruct((n, o), out_dtype),
        grid_spec=pltpu.PrefetchScalarGridSpec(
            num_scalar_prefetch=0,
            grid=grid,
            in_specs=in_specs,
            out_specs=pl.BlockSpec((tile_n, o), lambda i: (i, 0)),
        ),
        compiler_params=pltpu.CompilerParams(
            dimension_semantics=("parallel",),
            vmem_limit_bytes=vmem_limit),
    )(*operands)


def xavier_uniform(key, shape, dtype=jnp.float32):
    fan_in, fan_out = shape
    bound = (6.0 / (fan_in + fan_out)) ** 0.5
    return jax.random.uniform(key, shape, dtype, minval=-bound, maxval=bound)


if __name__ == "__main__":
    # Small deterministic example: 128 nodes, 8 neighbors, hidden 32 -> 64.
    num_nodes, num_neighbors, input_dim, output_dim = 128, 8, 32, 64
    hi = jax.lax.Precision.HIGHEST

    key = jax.random.PRNGKey(0)
    k_x, k_w, k_b = jax.random.split(key, 3)
    x = jax.random.normal(
        k_x, (num_nodes, num_neighbors, input_dim), dtype=jnp.float32)
    weight = xavier_uniform(k_w, (input_dim, output_dim))
    bias = 0.1 * jax.random.normal(k_b, (output_dim,), dtype=jnp.float32)

    # Tolerances leave headroom for the MXU's generation-dependent f32 path.
    TOL = dict(atol=1e-3, rtol=1e-3)

    # 1) Module defaults: mean aggregation, no bias (MXU-fused K reduction).
    out = jax.block_until_ready(
        neighbor_aggregator(x, weight, None, aggr_method="mean"))
    ref = jnp.matmul(jnp.mean(x, axis=1), weight, precision=hi)
    assert out.shape == (num_nodes, output_dim)
    assert jnp.allclose(out, ref, **TOL)

    # 2) sum aggregation with bias (MXU-fused K reduction + bias add).
    out_sb = jax.block_until_ready(
        neighbor_aggregator(x, weight, bias, aggr_method="sum"))
    ref_sb = jnp.matmul(jnp.sum(x, axis=1), weight, precision=hi) + bias
    assert jnp.allclose(out_sb, ref_sb, **TOL)

    # 3) max aggregation with a node count that does not divide the tile
    #    (3-D block, sublane reduction, masked edge block).
    x_r = x[:100]
    out_mx = jax.block_until_ready(
        neighbor_aggregator(x_r, weight, None, aggr_method="max"))
    ref_mx = jnp.matmul(jnp.max(x_r, axis=1), weight, precision=hi)
    assert out_mx.shape == (100, output_dim)
    assert jnp.allclose(out_mx, ref_mx, **TOL)

    # 4) bf16 input streaming (dominant HBM stream halved; f32 accumulate).
    x_bf = x.astype(jnp.bfloat16)
    out_bf = jax.block_until_ready(
        neighbor_aggregator(x_bf, weight, None, aggr_method="mean"))
    ref_bf = jnp.matmul(jnp.mean(x_bf.astype(jnp.float32), axis=1), weight,
                        precision=hi)
    assert out_bf.dtype == jnp.float32
    assert jnp.allclose(out_bf, ref_bf, atol=2e-2, rtol=2e-2)

    # 5) Forced un-fused fallback (in-kernel sublane sum + small weight),
    #    exercising the large-weight fallback path.
    out_uf = jax.block_until_ready(
        neighbor_aggregator(x, weight, bias, aggr_method="mean",
                            fuse_reduction=False))
    ref_uf = jnp.matmul(jnp.mean(x, axis=1), weight, precision=hi) + bias
    assert jnp.allclose(out_uf, ref_uf, **TOL)

    print("KERNEL_OK")
</pallas_src>

<mosaic_0001>
module attributes {stable_mosaic.version = 11 : i64} {
  func.func @_aggregator_kernel(%arg0: i32, %arg1: memref<32x256xf32, #tpu.memory_space<vmem>>, %arg2: memref<256x64xf32, #tpu.memory_space<vmem>>, %arg3: memref<32x64xf32, #tpu.memory_space<vmem>>) attributes {dimension_semantics = [#tpu.dimension_semantics<parallel>], iteration_bounds = array<i64: 4>, scalar_prefetch = 0 : i64, scratch_operands = 0 : i64, tpu.core_type = #tpu.core_type<tc>, window_params = [{transform_indices = @transform_0, window_bounds = array<i64: 32, 256>}, {pipeline_mode = #tpu.pipeline_mode<synchronous>, transform_indices = @transform_1, window_bounds = array<i64: 256, 64>}, {transform_indices = @transform_2, window_bounds = array<i64: 32, 64>}]} {
    %c0 = arith.constant 0 : index
    %c0_0 = arith.constant 0 : index
    %0 = vector.load %arg2[%c0, %c0_0] : memref<256x64xf32, #tpu.memory_space<vmem>>, vector<256x64xf32>
    %c0_1 = arith.constant 0 : index
    %c0_2 = arith.constant 0 : index
    %1 = vector.load %arg1[%c0_1, %c0_2] : memref<32x256xf32, #tpu.memory_space<vmem>>, vector<32x256xf32>
    %cst = arith.constant dense<0.000000e+00> : vector<32x64xf32>
    %2 = tpu.matmul %1, %0, %cst {dimension_numbers = #tpu.dot_dimension_numbers<[1], [0], [0], [1], [0, 0, 1, 1], [], []>} : vector<32x256xf32>, vector<256x64xf32>, vector<32x64xf32> -> vector<32x64xf32>
    %c0_3 = arith.constant 0 : index
    %c0_4 = arith.constant 0 : index
    %3 = vector.load %arg3[%c0_3, %c0_4] : memref<32x64xf32, #tpu.memory_space<vmem>>, vector<32x64xf32>
    tpu.vector_store %arg3[%c0_3, %c0_4], %2 {strides = array<i32>} : memref<32x64xf32, #tpu.memory_space<vmem>>, vector<32x64xf32>,
    return
  }
  func.func @transform_0(%arg0: i32) -> (i32, i32) {
    %c0_i32 = arith.constant 0 : i32
    %c0_i32_0 = arith.constant 0 : i32
    return %arg0, %c0_i32 : i32, i32
  }
  func.func @transform_1(%arg0: i32) -> (i32, i32) {
    %c0_i32 = arith.constant 0 : i32
    %c0_i32_0 = arith.constant 0 : i32
    %c0_i32_1 = arith.constant 0 : i32
    return %c0_i32, %c0_i32_0 : i32, i32
  }
  func.func @transform_2(%arg0: i32) -> (i32, i32) {
    %c0_i32 = arith.constant 0 : i32
    %c0_i32_0 = arith.constant 0 : i32
    return %arg0, %c0_i32 : i32, i32
  }
}

</mosaic_0001>

<llo_original>
// kernel: tpu_custom_call.1
$region0: #{tpu_custom_call.1}
  #allocation0 [shape = 'u32[]', space=smem, size = 0x4, offset = 0x4, fixed_abs, tag = 'smem constant byte address 0x4 - core index']
  #allocation1 [shape = 'u32[72,128]{1,0:T(1,128)}', space=vmem, size = 0x9000, scoped, tag = 'internal scratch']
  %s0 = inlined_call_operand.vmem [shape: f32[128,256], index: 0, kind: input, shape index: {}]
  %s1 = inlined_call_operand.vmem [shape: f32[256,64], index: 1, kind: input, shape index: {}]
  %s2 = inlined_call_operand.vmem [shape: f32[128,64], index: 2, kind: output, shape index: {}]
  %s3 = sld [smem:[#allocation0]]
  $region41: #{tpu_custom_call.1} parent=0
    _
  %s5 = ssub.s32 1, %s3
  %s6 = scalar_select 0, %s5, %s3
  loop: start=0, step=1, limit=6
  $region2: #{tpu_custom_call.1} parent=0 // loop_pre_header
    _
  $region3: #{tpu_custom_call.1} parent=0 // loop_header
    %s8 = sphi 0, %s12
    %p9 = scmp.ge.s32.totalorder %s8, 6
    %s18 = sphi 0, %s20
    %s21 = sphi 0, %s18
    %s22 = sphi 0, %s21
    %s38 = sphi 0, %s22
    %s42 = sphi 0, %s42
    %s44 = sphi 0, %s42
    %s45 = sphi 0, %s44
    %s59 = sphi 0, %s45
    %s65 = sphi 0, %s67
    %s68 = sphi 0, %s65
    %s69 = sphi 0, %s68
    %s85 = sphi 0, %s69
  $region4: #{tpu_custom_call.1} parent=0 // loop_header_branch
    %11 = sbr.rel (%p9) target = $region8
  $region5: #{tpu_custom_call.1} parent=0 // loop_body
    %s13 = ssub.s32 %s8, 1
    %s14 = ssub.s32 %s8, 2
    %s15 = sadd.s32 %s8, 1
    %s16 = ssub.s32 %s8, %s15
    %p17 = scmp.eq.s32.totalorder %s16, 0
    %s19 = sadd.s32 %s18, 1
    %s20 = scalar_select %p17, %s18, %s19
    %p23 = pneg %p17
    %p24 = scmp.eq.s32.totalorder %s8, 3
    %p25 = por %p23, %p24
    %p26 = scmp.ne.s32.totalorder %s18, %s21
    %p27 = scmp.eq.s32.totalorder %s8, 0
    %p28 = por %p26, %p27
    %p29 = scmp.ne.s32.totalorder %s18, %s21
    %p30 = scmp.eq.s32.totalorder %s13, 3
    %p31 = por %p29, %p30
    %p32 = scmp.ne.s32.totalorder %s21, %s22
    %p33 = scmp.eq.s32.totalorder %s13, 0
    %p34 = por %p32, %p33
    %p35 = scmp.ne.s32.totalorder %s21, %s22
    %p36 = scmp.eq.s32.totalorder %s14, 3
    %p37 = por %p35, %p36
    %p39 = scmp.ne.s32.totalorder %s22, %s38
    %p40 = scmp.eq.s32.totalorder %s14, 0
    %p41 = por %p39, %p40
    %s43 = sadd.s32 %s42, 1
    %p46 = scmp.eq.s32.totalorder %s8, 3
    %p47 = scmp.ne.s32.totalorder %s42, %s44
    %p48 = scmp.eq.s32.totalorder %s8, 0
    %p49 = por %p47, %p48
    %p50 = scmp.ne.s32.totalorder %s42, %s44
    %p51 = scmp.eq.s32.totalorder %s13, 3
    %p52 = por %p50, %p51
    %p53 = scmp.ne.s32.totalorder %s44, %s45
    %p54 = scmp.eq.s32.totalorder %s13, 0
    %p55 = por %p53, %p54
    %p56 = scmp.ne.s32.totalorder %s44, %s45
    %p57 = scmp.eq.s32.totalorder %s14, 3
    %p58 = por %p56, %p57
    %p60 = scmp.ne.s32.totalorder %s45, %s59
    %p61 = scmp.eq.s32.totalorder %s14, 0
    %p62 = por %p60, %p61
    %s63 = ssub.s32 %s8, %s15
    %p64 = scmp.eq.s32.totalorder %s63, 0
    %s66 = sadd.s32 %s65, 1
    %s67 = scalar_select %p64, %s65, %s66
    %p70 = pneg %p64
    %p71 = scmp.eq.s32.totalorder %s8, 3
    %p72 = por %p70, %p71
    %p73 = scmp.ne.s32.totalorder %s65, %s68
    %p74 = scmp.eq.s32.totalorder %s8, 0
    %p75 = por %p73, %p74
    %p76 = scmp.ne.s32.totalorder %s65, %s68
    %p77 = scmp.eq.s32.totalorder %s13, 3
    %p78 = por %p76, %p77
    %p79 = scmp.ne.s32.totalorder %s68, %s69
    %p80 = scmp.eq.s32.totalorder %s13, 0
    %p81 = por %p79, %p80
    %p82 = scmp.ne.s32.totalorder %s68, %s69
    %p83 = scmp.eq.s32.totalorder %s14, 3
    %p84 = por %p82, %p83
    %p86 = scmp.ne.s32.totalorder %s69, %s85
    %p87 = scmp.eq.s32.totalorder %s14, 0
    %p88 = por %p86, %p87
    %p89 = scmp.le.s32.totalorder 1, %s8
    %p90 = scmp.lt.s32.totalorder %s8, 5
    %p91 = pnand %p89, %p90
    %p92 = pneg %p91
    // Predicated region
    $region9: #{tpu_custom_call.1} parent=5 // pred_check
      _
    $region10: #{tpu_custom_call.1} parent=5 // pred_check_branch
      %94 = sbr.rel (%p91) target = $region12
    $region11: #{tpu_custom_call.1} parent=5 // pred_region
      %s95 = ssub.s32 %s8, 1
      // Predicated region
      $region13: #{tpu_custom_call.1} parent=11 // pred_check
        %p96 = pneg %p55
      $region14: #{tpu_custom_call.1} parent=11 // pred_check_branch
        %98 = sbr.rel (%p96) target = $region16
      $region15: #{tpu_custom_call.1} parent=11 // pred_region
        _
      $region16: #{tpu_custom_call.1} parent=11 // pred_fallthru
        _
    $region12: #{tpu_custom_call.1} parent=5 // pred_fallthru
      _
    %p99 = scmp.lt.s32.totalorder %s8, 4
    // Predicated region
    $region17: #{tpu_custom_call.1} parent=5 // pred_check
      %p100 = pneg %p99
    $region18: #{tpu_custom_call.1} parent=5 // pred_check_branch
      %102 = sbr.rel (%p100) target = $region20
    $region19: #{tpu_custom_call.1} parent=5 // pred_region
      // Predicated region
      $region21: #{tpu_custom_call.1} parent=19 // pred_check
        %p103 = pneg %p28
      $region22: #{tpu_custom_call.1} parent=19 // pred_check_branch
        %105 = sbr.rel (%p103) target = $region24
      $region23: #{tpu_custom_call.1} parent=19 // pred_region
        %s106 = smul.u32 4, %s8
        %p107 = scmp.lt.s32.totalorder %s106, 15
        %s108 = scalar_select %p107, %s106, 15
        %s109 = smul.addr %s108, 2
        %s110 = smul.addr %s109, 8
        %s111 = scalar_lea.vmem %s0, %s110
        %s112 = smul.u32 4, %s8
      $region24: #{tpu_custom_call.1} parent=19 // pred_fallthru
        _
    $region20: #{tpu_custom_call.1} parent=5 // pred_fallthru
      _
    %p113 = scmp.le.s32.totalorder 1, %s8
    %p114 = scmp.lt.s32.totalorder %s8, 5
    %p115 = pnand %p113, %p114
    %p116 = pneg %p115
    // Predicated region
    $region25: #{tpu_custom_call.1} parent=5 // pred_check
      _
    $region26: #{tpu_custom_call.1} parent=5 // pred_check_branch
      %118 = sbr.rel (%p115) target = $region28
    $region27: #{tpu_custom_call.1} parent=5 // pred_region
      %s119 = ssub.s32 %s8, 1
      %s120 = smul.u32 4, %s13
      %p121 = scmp.lt.s32.totalorder %s120, 15
      %s122 = scalar_select %p121, %s120, 15
      %s123 = smul.addr %s122, 2
      %s124 = smul.addr %s123, 8
      %s125 = scalar_lea.vmem %s0, %s124
      %p126 = pneg %p34
      %p127 = pneg %p31
      %p128 = pneg %p55
      %p129 = pneg %p52
      %p130 = pneg %p81
      %p131 = pneg %p78
      %s132 = smul.u32 4, %s13
      %p133 = scmp.lt.s32.totalorder %s132, 15
      %s134 = scalar_select %p133, %s132, 15
      %s135 = smul.addr %s134, 8
      %s136 = scalar_lea.vmem %s2, %s135
      %s137 = smul.u32 4, %s13
      %p138 = scmp.lt.s32.totalorder %s137, 15
      %s139 = scalar_select %p138, %s137, 15
      %s140 = smul.addr %s139, 2
      %s141 = smul.addr %s140, 8
      %s142 = scalar_lea.vmem %s0, %s141
      %s143 = smul.u32 4, %s13
      %s144 = smul.u32 4, %s13
      %p145 = scmp.lt.s32.totalorder %s144, 15
      %s146 = scalar_select %p145, %s144, 15
      %s147 = smul.addr %s146, 8
      %s148 = scalar_lea.vmem %s2, %s147
      %s149 = smul.u32 4, %s13
      %v150 = vld [vmem:[%s1] sm:$0xff]
      %v151 = vld [vmem:[%s1 + $0x8] sm:$0xff]
      %v152 = vld [vmem:[%s1 + $0x10] sm:$0xff]
      %v153 = vld [vmem:[%s1 + $0x18] sm:$0xff]
      %v154 = vld [vmem:[%s1 + $0x20] sm:$0xff]
      %v155 = vld [vmem:[%s1 + $0x28] sm:$0xff]
      %v156 = vld [vmem:[%s1 + $0x30] sm:$0xff]
      %v157 = vld [vmem:[%s1 + $0x38] sm:$0xff]
      %v158 = vld [vmem:[%s1 + $0x40] sm:$0xff]
      %v159 = vld [vmem:[%s1 + $0x48] sm:$0xff]
      %v160 = vld [vmem:[%s1 + $0x50] sm:$0xff]
      %v161 = vld [vmem:[%s1 + $0x58] sm:$0xff]
      %v162 = vld [vmem:[%s1 + $0x60] sm:$0xff]
      %v163 = vld [vmem:[%s1 + $0x68] sm:$0xff]
      %v164 = vld [vmem:[%s1 + $0x70] sm:$0xff]
      %v165 = vld [vmem:[%s1 + $0x78] sm:$0xff]
      %v166 = vld [vmem:[%s1 + $0x80] sm:$0xff]
      %v167 = vld [vmem:[%s1 + $0x88] sm:$0xff]
      %v168 = vld [vmem:[%s1 + $0x90] sm:$0xff]
      %v169 = vld [vmem:[%s1 + $0x98] sm:$0xff]
      %v170 = vld [vmem:[%s1 + $0xa0] sm:$0xff]
      %v171 = vld [vmem:[%s1 + $0xa8] sm:$0xff]
      %v172 = vld [vmem:[%s1 + $0xb0] sm:$0xff]
      %v173 = vld [vmem:[%s1 + $0xb8] sm:$0xff]
      %v174 = vld [vmem:[%s1 + $0xc0] sm:$0xff]
      %v175 = vld [vmem:[%s1 + $0xc8] sm:$0xff]
      %v176 = vld [vmem:[%s1 + $0xd0] sm:$0xff]
      %v177 = vld [vmem:[%s1 + $0xd8] sm:$0xff]
      %v178 = vld [vmem:[%s1 + $0xe0] sm:$0xff]
      %v179 = vld [vmem:[%s1 + $0xe8] sm:$0xff]
      %v180 = vld [vmem:[%s1 + $0xf0] sm:$0xff]
      %v181 = vld [vmem:[%s1 + $0xf8] sm:$0xff]
      %v182 = vld [vmem:[%s142] sm:$0xff]
      %v183 = vld [vmem:[%s142 + $0x8] sm:$0xff]
      %v184 = vld [vmem:[%s142 + $0x10] sm:$0xff]
      %v185 = vld [vmem:[%s142 + $0x18] sm:$0xff]
      %v186 = vld [vmem:[%s142 + $0x20] sm:$0xff]
      %v187 = vld [vmem:[%s142 + $0x28] sm:$0xff]
      %v188 = vld [vmem:[%s142 + $0x30] sm:$0xff]
      %v189 = vld [vmem:[%s142 + $0x38] sm:$0xff]
      %190 = vmatpush.msra.mxu0 %v165
      %191 = vmatpush.msra.mxu0 %v164
      %192 = vmatpush.msra.mxu0 %v163
      %193 = vmatpush.msra.mxu0 %v162
      %194 = vmatpush.msra.mxu0 %v161
      %195 = vmatpush.msra.mxu0 %v160
      %196 = vmatpush.msra.mxu0 %v159
      %197 = vmatpush.msra.mxu0 %v158
      %198 = vmatpush.msra.mxu0 %v157
      %199 = vmatpush.msra.mxu0 %v156
      %200 = vmatpush.msra.mxu0 %v155
      %201 = vmatpush.msra.mxu0 %v154
      %202 = vmatpush.msra.mxu0 %v153
      %203 = vmatpush.msra.mxu0 %v152
      %204 = vmatpush.msra.mxu0 %v151
      %205 = vmatpush.msra.mxu0 %v150
      %206 = vmatmul.f32.gmra.mxu0 %v182
      %v207 = vpop.f32.mrf.mxu0
      %v208 = vadd.f32 0.0, %v207
      %209 = vmatmul.f32.gmra.mxu0 %v184
      %v210 = vpop.f32.mrf.mxu0
      %v211 = vadd.f32 0.0, %v210
      %212 = vmatmul.f32.gmra.mxu0 %v186
      %v213 = vpop.f32.mrf.mxu0
      %v214 = vadd.f32 0.0, %v213
      %215 = vmatmul.f32.gmra.mxu0 %v188
      %v216 = vpop.f32.mrf.mxu0
      %v217 = vadd.f32 0.0, %v216
      %218 = vdwg.mxu0
      %219 = vmatpush.msra.mxu0 %v181
      %220 = vmatpush.msra.mxu0 %v180
      %221 = vmatpush.msra.mxu0 %v179
      %222 = vmatpush.msra.mxu0 %v178
      %223 = vmatpush.msra.mxu0 %v177
      %224 = vmatpush.msra.mxu0 %v176
      %225 = vmatpush.msra.mxu0 %v175
      %226 = vmatpush.msra.mxu0 %v174
      %227 = vmatpush.msra.mxu0 %v173
      %228 = vmatpush.msra.mxu0 %v172
      %229 = vmatpush.msra.mxu0 %v171
      %230 = vmatpush.msra.mxu0 %v170
      %231 = vmatpush.msra.mxu0 %v169
      %232 = vmatpush.msra.mxu0 %v168
      %233 = vmatpush.msra.mxu0 %v167
      %234 = vmatpush.msra.mxu0 %v166
      %235 = vmatmul.f32.gmra.mxu0 %v183
      %v236 = vpop.f32.mrf.mxu0
      %v237 = vadd.f32 %v208, %v236
      %238 = vmatmul.f32.gmra.mxu0 %v185
      %v239 = vpop.f32.mrf.mxu0
      %v240 = vadd.f32 %v211, %v239
      %241 = vmatmul.f32.gmra.mxu0 %v187
      %v242 = vpop.f32.mrf.mxu0
      %v243 = vadd.f32 %v214, %v242
      %244 = vmatmul.f32.gmra.mxu0 %v189
      %v245 = vpop.f32.mrf.mxu0
      %v246 = vadd.f32 %v217, %v245
      %247 = vdwg.mxu0
      %vm248 = vcmask 523264
      %249 = vst.msk [vmem:[%s148] sm:$0xff] %vm248, %v237
      %250 = vst.msk [vmem:[%s148 + $0x8] sm:$0xff] %vm248, %v240
      %251 = vst.msk [vmem:[%s148 + $0x10] sm:$0xff] %vm248, %v243
      %252 = vst.msk [vmem:[%s148 + $0x18] sm:$0xff] %vm248, %v246
      %s253 = smul.u32 4, %s13
      %p254 = scmp.lt.s32.totalorder %s253, 15
      %s255 = scalar_select %p254, %s253, 15
      %s256 = smul.addr %s255, 8
      %s257 = scalar_lea.vmem %s2, %s256
      // Predicated region
      $region29: #{tpu_custom_call.1} parent=27 // pred_check
        %p258 = pneg %p78
      $region30: #{tpu_custom_call.1} parent=27 // pred_check_branch
        %260 = sbr.rel (%p258) target = $region32
      $region31: #{tpu_custom_call.1} parent=27 // pred_region
        %s261 = smul.u32 4, %s13
      $region32: #{tpu_custom_call.1} parent=27 // pred_fallthru
        _
    $region28: #{tpu_custom_call.1} parent=5 // pred_fallthru
      _
    %p262 = scmp.le.s32.totalorder 2, %s8
    // Predicated region
    $region33: #{tpu_custom_call.1} parent=5 // pred_check
      %p263 = pneg %p262
    $region34: #{tpu_custom_call.1} parent=5 // pred_check_branch
      %265 = sbr.rel (%p263) target = $region36
    $region35: #{tpu_custom_call.1} parent=5 // pred_region
      %s266 = ssub.s32 %s8, 2
      // Predicated region
      $region37: #{tpu_custom_call.1} parent=35 // pred_check
        %p267 = pneg %p84
      $region38: #{tpu_custom_call.1} parent=35 // pred_check_branch
        %269 = sbr.rel (%p267) target = $region40
      $region39: #{tpu_custom_call.1} parent=35 // pred_region
        %s270 = smul.u32 4, %s14
        %p271 = scmp.lt.s32.totalorder %s270, 15
        %s272 = scalar_select %p271, %s270, 15
        %s273 = smul.addr %s272, 8
        %s274 = scalar_lea.vmem %s2, %s273
      $region40: #{tpu_custom_call.1} parent=35 // pred_fallthru
        _
    $region36: #{tpu_custom_call.1} parent=5 // pred_fallthru
      _
  $region6: #{tpu_custom_call.1} parent=0 // loop_footer
    %s12 = sadd.s32 1, %s8
  $region7: #{tpu_custom_call.1} parent=0 // loop_footer_branch
    %7 = sbr.rel target = $region3
  $region8: #{tpu_custom_call.1} parent=0 // loop_exit
    _

</llo_original>
